<compile_context>
chip_gen: v7x
topology: tpu7x:2x2x1
jax: 0.10.0
libtpu: 0.0.40
codegen_flags: <defaults>
</compile_context>

<pallas_src>
import functools

import jax
import jax.numpy as jnp
from jax.experimental import pallas as pl
from jax.experimental.pallas import tpu as pltpu


_LANE = 128
_SUBLANE = 8
_MAX_TILE_ROWS = 1024
_MIN_BIG_TILE = 512
_TARGET_STEPS = 8


def _vmem_limit_bytes() -> int:
    """Per-chip VMEM limit: ~75% of physical, capped at 96 MiB."""
    cap = 64 * 1024 * 1024  # conservative default (v7x per-TC VMEM)
    try:
        info = pltpu.get_tpu_info()
        cap = int(getattr(info, "vmem_capacity_bytes", cap))
    except Exception:
        pass
    return min((cap * 3) // 4, 96 * 1024 * 1024)


def _choose_tile_rows(n_rows: int, num_classes: int, itemsize: int,
                      tile_budget: int) -> int:
    """Row tile sized to a VMEM budget that includes the f32 temporaries."""
    if n_rows <= _SUBLANE:
        return n_rows  # full-dim block is exempt from the (8,128) rule
    # Per tile row: double-buffered input at its dtype + ~3 full-width f32
    # temporaries inside the kernel (upcast, exp(x-m), where-select).
    bytes_per_row = num_classes * (2 * itemsize + 3 * 4)
    tile = max(_SUBLANE, min(tile_budget // max(bytes_per_row, 1),
                             _MAX_TILE_ROWS, n_rows))
    # Aim for several grid steps so double-buffering overlaps DMA with compute
    # (and v7x's two TensorCores both get work); keep tiles >= ~512 rows for
    # HBM efficiency when N is large.  (v7x nicety: an even step count shards
    # perfectly across the 2 TCs.)
    if n_rows >= _TARGET_STEPS * _MIN_BIG_TILE:
        tile = min(tile, max(_MIN_BIG_TILE, pl.cdiv(n_rows, _TARGET_STEPS)))
    elif n_rows >= 4 * _LANE:
        tile = min(tile, max(_LANE, n_rows // 4))
    elif n_rows >= 2 * _LANE:
        tile = min(tile, max(_LANE, n_rows // 2))
    # HW-friendly rounding.
    if tile >= _LANE:
        tile -= tile % _LANE
    else:
        tile = max(_SUBLANE, tile - tile % _SUBLANE)
    return tile


def _label_smoothing_ce_kernel(x_ref, t_ref, o_ref, *, smoothing: float,
                               num_classes: int):
    confidence = 1.0 - smoothing

    x = x_ref[...].astype(jnp.float32)          # (TM, C); upcast in-kernel
    t = t_ref[...]                              # (TM, 1) int32

    # (1, C) class-index row; broadcasts against the (TM, 1) targets so no
    # full-tile int32 temporary is created.
    cls_idx = jax.lax.broadcasted_iota(jnp.int32, (1, x.shape[-1]), 1)

    # Fused log-softmax pieces — `shifted` is never materialized.
    m = jnp.max(x, axis=-1, keepdims=True)                 # (TM, 1)
    l = jnp.sum(jnp.exp(x - m), axis=-1)                   # (TM,)
    # gather(x, target) via masked sum (no dynamic gather on TPU).
    x_t = jnp.sum(jnp.where(cls_idx == t, x, 0.0), axis=-1)   # (TM,)
    sum_x = jnp.sum(x, axis=-1)                             # (TM,)

    lse = m[:, 0] + jnp.log(l)                              # (TM,)
    # loss = confidence*(lse - x_t) + smoothing*(lse - sum_x/C)
    loss = lse - confidence * x_t - (smoothing / num_classes) * sum_x

    # Lane-dense store: output block is (1, 1, TM), last dim on lanes.
    o_ref[...] = loss[None, None, :].astype(o_ref.dtype)


def label_smoothing_cross_entropy(x: jax.Array,
                                  target: jax.Array,
                                  smoothing: float = 0.1,
                                  tile_rows: int | None = None) -> jax.Array:
    """x: (N, C) float (f32/bf16/f16), target: (N,) int -> per-row loss (N,) f32."""
    assert smoothing < 1.0
    N, C = x.shape
    itemsize = jnp.dtype(x.dtype).itemsize

    vmem_limit = _vmem_limit_bytes()
    if tile_rows is None:
        tile_rows = _choose_tile_rows(N, C, itemsize, vmem_limit // 2)

    num_tiles = pl.cdiv(N, tile_rows)  # ragged edge block is allowed: the OOB
    # rows produce garbage losses that are sliced off by [:N] below.

    target2d = target.astype(jnp.int32).reshape(N, 1)

    kernel = functools.partial(_label_smoothing_ce_kernel,
                               smoothing=float(smoothing), num_classes=C)

    out = pl.pallas_call(
        kernel,
        out_shape=jax.ShapeDtypeStruct((num_tiles, 1, tile_rows), jnp.float32),
        grid_spec=pltpu.PrefetchScalarGridSpec(
            num_scalar_prefetch=0,
            grid=(num_tiles,),
            in_specs=[
                # Last dim = full C is exempt from the 128-lane divisibility
                # rule, so no class-axis padding of x is needed.
                pl.BlockSpec((tile_rows, C), lambda i: (i, 0)),
                pl.BlockSpec((tile_rows, 1), lambda i: (i, 0)),
            ],
            out_specs=pl.BlockSpec((1, 1, tile_rows), lambda i: (i, 0, 0)),
        ),
        compiler_params=pltpu.CompilerParams(
            dimension_semantics=("parallel",),
            vmem_limit_bytes=vmem_limit),
        cost_estimate=pl.CostEstimate(
            flops=6 * N * C,
            transcendentals=N * C,
            bytes_accessed=N * C * itemsize + N * 4 + N * 4),
    )(x, target2d)

    return out.reshape(num_tiles * tile_rows)[:N]


def _reference(x, target, smoothing):
    logprobs = jax.nn.log_softmax(x.astype(jnp.float32), axis=-1)
    nll = -jnp.take_along_axis(logprobs, target[:, None], axis=-1)[:, 0]
    smooth = -jnp.mean(logprobs, axis=-1)
    return (1.0 - smoothing) * nll + smoothing * smooth


if __name__ == "__main__":
    key = jax.random.PRNGKey(0)

    # Case 1: small shapes consistent with the module (seq=8 rows, hidden=32
    # classes) — single tile, non-128 class axis handled without padding.
    N, C = 8, 32
    kx, kt = jax.random.split(key)
    x = jax.random.normal(kx, (N, C), dtype=jnp.float32)
    target = jax.random.randint(kt, (N,), 0, C, dtype=jnp.int32)

    loss = jax.block_until_ready(
        label_smoothing_cross_entropy(x, target, smoothing=0.1))
    ref = _reference(x, target, 0.1)
    assert jnp.allclose(loss, ref, atol=1e-5, rtol=1e-5), (loss, ref)

    # Case 2: multi-tile grid with ragged N and ragged C (no wrapper padding).
    N2, C2 = 200, 160
    kx2, kt2 = jax.random.split(kt)
    x2 = jax.random.normal(kx2, (N2, C2), dtype=jnp.float32)
    t2 = jax.random.randint(kt2, (N2,), 0, C2, dtype=jnp.int32)

    loss2 = jax.block_until_ready(
        label_smoothing_cross_entropy(x2, t2, smoothing=0.1))
    ref2 = _reference(x2, t2, 0.1)
    assert jnp.allclose(loss2, ref2, atol=1e-5, rtol=1e-5), (loss2, ref2)

    print("KERNEL_OK")
</pallas_src>

<mosaic_0001>
module attributes {stable_mosaic.version = 11 : i64} {
  func.func @_label_smoothing_ce_kernel(%arg0: i32, %arg1: memref<8x32xf32, #tpu.memory_space<vmem>>, %arg2: memref<8x1xi32, #tpu.memory_space<vmem>>, %arg3: memref<1x1x8xf32, #tpu.memory_space<vmem>>) attributes {dimension_semantics = [#tpu.dimension_semantics<parallel>], iteration_bounds = array<i64: 1>, scalar_prefetch = 0 : i64, scratch_operands = 0 : i64, tpu.core_type = #tpu.core_type<tc>, window_params = [{transform_indices = @transform_0, window_bounds = array<i64: 8, 32>}, {transform_indices = @transform_1, window_bounds = array<i64: 8, 1>}, {transform_indices = @transform_2, window_bounds = array<i64: 1, 1, 8>}]} {
    %c0 = arith.constant 0 : index
    %c0_0 = arith.constant 0 : index
    %0 = vector.load %arg1[%c0, %c0_0] : memref<8x32xf32, #tpu.memory_space<vmem>>, vector<8x32xf32>
    %c0_1 = arith.constant 0 : index
    %c0_2 = arith.constant 0 : index
    %1 = vector.load %arg2[%c0_1, %c0_2] : memref<8x1xi32, #tpu.memory_space<vmem>>, vector<8x1xi32>
    %2 = tpu.iota {dimensions = array<i32: 1>} : vector<1x32xi32>
    %cst = arith.constant dense<0xFF800000> : vector<8xf32>
    %3 = vector.multi_reduction <maximumf>, %0, %cst [1] : vector<8x32xf32> to vector<8xf32>
    %4 = vector.shape_cast %3 : vector<8xf32> to vector<8x1xf32>
    %5 = vector.broadcast %4 : vector<8x1xf32> to vector<8x32xf32>
    %6 = arith.subf %0, %5 : vector<8x32xf32>
    %7 = math.exp %6 : vector<8x32xf32>
    %cst_3 = arith.constant dense<0.000000e+00> : vector<8xf32>
    %8 = vector.multi_reduction <add>, %7, %cst_3 [1] : vector<8x32xf32> to vector<8xf32>
    %9 = vector.broadcast %2 : vector<1x32xi32> to vector<8x32xi32>
    %10 = vector.broadcast %1 : vector<8x1xi32> to vector<8x32xi32>
    %11 = arith.cmpi eq, %9, %10 : vector<8x32xi32>
    %cst_4 = arith.constant 0.000000e+00 : f32
    %12 = vector.broadcast %cst_4 : f32 to vector<8x32xf32>
    %13 = arith.select %11, %0, %12 : vector<8x32xi1>, vector<8x32xf32>
    %cst_5 = arith.constant dense<0.000000e+00> : vector<8xf32>
    %14 = vector.multi_reduction <add>, %13, %cst_5 [1] : vector<8x32xf32> to vector<8xf32>
    %cst_6 = arith.constant dense<0.000000e+00> : vector<8xf32>
    %15 = vector.multi_reduction <add>, %0, %cst_6 [1] : vector<8x32xf32> to vector<8xf32>
    %16 = vector.shape_cast %4 : vector<8x1xf32> to vector<8xf32>
    %17 = math.log %8 : vector<8xf32>
    %18 = arith.addf %16, %17 : vector<8xf32>
    %cst_7 = arith.constant 0.899999976 : f32
    %19 = vector.broadcast %cst_7 : f32 to vector<8xf32>
    %20 = arith.mulf %19, %14 : vector<8xf32>
    %21 = arith.subf %18, %20 : vector<8xf32>
    %cst_8 = arith.constant 3.125000e-03 : f32
    %22 = vector.broadcast %cst_8 : f32 to vector<8xf32>
    %23 = arith.mulf %22, %15 : vector<8xf32>
    %24 = arith.subf %21, %23 : vector<8xf32>
    %25 = vector.shape_cast %24 : vector<8xf32> to vector<1x1x8xf32>
    %c0_9 = arith.constant 0 : index
    %c0_10 = arith.constant 0 : index
    %c0_11 = arith.constant 0 : index
    %26 = vector.load %arg3[%c0_9, %c0_10, %c0_11] : memref<1x1x8xf32, #tpu.memory_space<vmem>>, vector<1x1x8xf32>
    tpu.vector_store %arg3[%c0_9, %c0_10, %c0_11], %25 {strides = array<i32>} : memref<1x1x8xf32, #tpu.memory_space<vmem>>, vector<1x1x8xf32>,
    return
  }
  func.func @transform_0(%arg0: i32) -> (i32, i32) {
    %c0_i32 = arith.constant 0 : i32
    %c0_i32_0 = arith.constant 0 : i32
    return %arg0, %c0_i32 : i32, i32
  }
  func.func @transform_1(%arg0: i32) -> (i32, i32) {
    %c0_i32 = arith.constant 0 : i32
    %c0_i32_0 = arith.constant 0 : i32
    return %arg0, %c0_i32 : i32, i32
  }
  func.func @transform_2(%arg0: i32) -> (i32, i32, i32) {
    %c0_i32 = arith.constant 0 : i32
    %c0_i32_0 = arith.constant 0 : i32
    %c0_i32_1 = arith.constant 0 : i32
    return %arg0, %c0_i32, %c0_i32_0 : i32, i32, i32
  }
}

</mosaic_0001>

<llo_original>
// kernel: tpu_custom_call.1
$region0: #{tpu_custom_call.1}
  #allocation0 [shape = 'u32[]', space=smem, size = 0x4, offset = 0x4, fixed_abs, tag = 'smem constant byte address 0x4 - core index']
  #allocation1 [shape = 'u32[144,128]{1,0:T(1,128)}', space=vmem, size = 0x12000, scoped, tag = 'internal scratch']
  %s0 = inlined_call_operand.vmem [shape: f32[8,32], index: 0, kind: input, shape index: {}]
  %s1 = inlined_call_operand.vmem [shape: s32[8,1], index: 1, kind: input, shape index: {}]
  %s2 = inlined_call_operand.hbm [shape: f32[1,1,8], index: 2, kind: output, shape index: {}]
  %s3 = sld [smem:[#allocation0]]
  $region18: #{tpu_custom_call.1} parent=0
    _
  %s5 = ssub.s32 1, %s3
  %s6 = scalar_select 0, %s5, %s3
  $region1: #{tpu_custom_call.1} parent=0
    #allocation2 [shape = 'u8[512]{0}', space=vmem, size = 0x400, scoped, tag = 'output window, operand 0, single buffered']
    #allocation3 [shape = 's32[1]{0}', space=sflag, size = 0x4, scoped, tag = 'scoped memory for tpu_custom_call.1']
    %7 = vsyncpa [#allocation3], 0
    // Predicated region
    $region2: #{tpu_custom_call.1} parent=1 // pred_check
      _
    $region3: #{tpu_custom_call.1} parent=1 // pred_check_branch
      %9 = sbr.rel (0) target = $region5
    $region4: #{tpu_custom_call.1} parent=1 // pred_region
      _
    $region5: #{tpu_custom_call.1} parent=1 // pred_fallthru
      _
    // Predicated region
    $region6: #{tpu_custom_call.1} parent=1 // pred_check
      _
    $region7: #{tpu_custom_call.1} parent=1 // pred_check_branch
      %11 = sbr.rel (0) target = $region9
    $region8: #{tpu_custom_call.1} parent=1 // pred_region
      _
    $region9: #{tpu_custom_call.1} parent=1 // pred_fallthru
      _
    %v12 = vld [vmem:[%s0] sm:$0xff]
    %v13 = vld [vmem:[%s1] sm:$0xff]
    %v14 = vlaneseq
    %v15 = vand.u32 %v14, 127
    %vm16 = vcmask 261120
    %v17 = vsel %vm16, %v12, -inf
    %18 = vmax.xlane.f32.xlu0 %v17
    %v19 = vpop.xlane.xlu0 %18
    %v20 = vsub.f32 %v12, %v19
    %v21 = vmul.f32 %v20, 1.442695
    %v22 = vpow.pop %v21
    %v23 = vsel %vm16, %v22, 0.0
    %24 = vadd.xlane.f32.xlu0 %v23
    %v25 = vpop.xlane.xlu0 %24
    %26 = vset.pattern.permute.xlu0 0
    %27 = vperm.xlu0 %26, %v13
    %v28 = vpop.permute.xlu0 %27
    %vm29 = vcmp.eq.s32.totalorder %v15, %v28
    %v30 = vsel %vm29, %v12, 0.0
    %v31 = vsel %vm16, %v30, 0.0
    %32 = vadd.xlane.f32.xlu0 %v31
    %v33 = vpop.xlane.xlu0 %32
    %v34 = vsel %vm16, %v12, 0.0
    %35 = vadd.xlane.f32.xlu0 %v34
    %v36 = vpop.xlane.xlu0 %35
    %v37 = vlog2.pop %v25
    %v38 = vmul.f32 %v37, 0.6931472
    %v39 = vadd.f32 %v19, %v38
    %v40 = vmul.f32 %v33, 0.9
    %v41 = vsub.f32 %v39, %v40
    %v42 = vmul.f32 %v36, 0.003125
    %v43 = vsub.f32 %v41, %v42
    %v45 = vlaneseq
    %v46 = vshrl.u32 %v45, 7
    %v47 = vsub.s32 %v15, %v46
    %v48 = vrot.slane %v43, %v47
    %vm50 = vcmask 57344
    %51 = vst.msk [vmem:[#allocation2] sm:$0x1] %vm50, %v48
    // Predicated region
    $region10: #{tpu_custom_call.1} parent=1 // pred_check
      _
    $region11: #{tpu_custom_call.1} parent=1 // pred_check_branch
      %53 = sbr.rel (0) target = $region13
    $region12: #{tpu_custom_call.1} parent=1 // pred_region
      %s55 = ssub.s32 16, 16
      %56 = vsyncadd [#allocation3], %s55
      %s58 = sshll.u32 [#allocation2], 4
      %s59 = int_to_ptr.vmem [resolvable:$true] %s58
      %61 = dma.vmem_to_hbm [thread:$0]  %s59, 16, %s2, [#allocation3]
    $region13: #{tpu_custom_call.1} parent=1 // pred_fallthru
      _
    // Predicated region
    $region14: #{tpu_custom_call.1} parent=1 // pred_check
      _
    $region15: #{tpu_custom_call.1} parent=1 // pred_check_branch
      %63 = sbr.rel (0) target = $region17
    $region16: #{tpu_custom_call.1} parent=1 // pred_region
      %64 = dma.done [#allocation3], 16
    $region17: #{tpu_custom_call.1} parent=1 // pred_fallthru
      _
    %65 = vsyncpa [#allocation3], 1

</llo_original>
